<compile_context>
chip_gen: v6e
topology: v6e:2x2x1
jax: 0.10.0
libtpu: 0.0.40
codegen_flags: <defaults>
</compile_context>

<pallas_src>
import jax
import jax.numpy as jnp
from jax.experimental import pallas as pl
from jax.experimental.pallas import tpu as pltpu

# ---- "config" (small, deterministic) ----
B = 2            # batch
S = 8            # sequence length
H = 32           # hidden_size
NUM_LAYERS = 4   # num_hidden_layers
NL = NUM_LAYERS + 2   # hidden-state stack depth used by mixing_layers
A = 512          # attention / final_forward inner width (fixed in the module)
T = 2            # cfg.target_size
N_DROP = 3       # cfg.dropout_sample_num
INIT_RANGE = 0.02  # config.initializer_range
MSD_AVERAGE = True
LOSS_FN = "MSE"
APPLY_SIGMOID = LOSS_FN in ("MSE", "CCC1", "CCC2", "PCC")

M = B * S        # flattened rows fed to the attention Linear
OUT_R, OUT_C = 8, 128   # lane-dense output tile (wrapper slices back to (B, T))


def head_kernel(x_ref, wmix_ref, bmix_ref,
                wa1_ref, ba1_ref, wa2_ref, ba2_ref,
                w1_ref, b1_ref, w2_ref, b2_ref,
                out_ref):
    # x_ref: (NL, B*S, H) — the whole (tiny) problem in one grid step.

    # --- mixing_layers: Linear(NL, 1) over the layer axis ---
    # scalar-broadcast FMA on the full flattened slab; no per-batch loop.
    mixed = x_ref[0] * wmix_ref[0]
    for l in range(1, NL):
        mixed = mixed + x_ref[l] * wmix_ref[l]
    mixed = mixed + bmix_ref[0]                                        # (B*S, H)

    # --- attention Linear(H, 512) + Tanh: one MXU matmul with M = B*S ---
    a1 = jnp.tanh(
        jnp.dot(mixed, wa1_ref[...],
                preferred_element_type=jnp.float32) + ba1_ref[...])    # (B*S, A)

    # --- attention Linear(512, 1): single lane reduction for all rows ---
    logits = (jnp.sum(a1 * wa2_ref[...], axis=1, keepdims=True)
              + ba2_ref[0])                                            # (B*S, 1)

    # --- per-batch softmax over seq + attention pooling, vectorized over B ---
    # S = 8 is exactly one sublane tile, so these reshapes are layout no-ops.
    logits_b = logits.reshape(B, S, 1)                                 # (B, S, 1)
    m = jnp.max(logits_b, axis=1, keepdims=True)                       # (B, 1, 1)
    e = jnp.exp(logits_b - m)
    w = e * pl.reciprocal(jnp.sum(e, axis=1, keepdims=True),
                          approx=True)                                 # (B, S, 1)
    feat = jnp.sum(w * mixed.reshape(B, S, H), axis=1)                 # (B, H)

    # --- Dropout_Linear(H, 512) (eval-mode branches folded in wrapper) + Tanh ---
    h1 = jnp.tanh(
        jnp.dot(feat, w1_ref[...], preferred_element_type=jnp.float32)
        + b1_ref[...])                                                 # (B, A)

    # --- Dropout_Linear(512, T): lane-dense (T, A) weight, stacked lane reduce ---
    logits_out = (jnp.sum(h1[:, None, :] * w2_ref[...], axis=2)
                  + b2_ref[...])                                       # (B, T)

    # --- sigmoid (loss_fn == 'MSE') ---
    res = jax.nn.sigmoid(logits_out) if APPLY_SIGMOID else logits_out  # (B, T)

    # Lane-dense output: full-tile unmasked zero store, then write the (B, T)
    # corner. Write-back DMA is a single full (8, 128) tile.
    out_ref[...] = jnp.zeros((OUT_R, OUT_C), jnp.float32)
    out_ref[:B, :T] = res


def fold_params(params):
    """One-time eval-mode folding of Dropout_Linear branches + lane-dense layout.

    Call once outside the per-step path; the result is what the kernel consumes.
    """
    wmix, bmix, wa1, ba1, wa2, ba2, w1, b1, w2, b2 = params
    branch_reduce = jnp.mean if MSD_AVERAGE else jnp.sum
    w1_eff = branch_reduce(w1, axis=0)                 # (H, A)
    b1_eff = branch_reduce(b1, axis=0)                 # (1, A)
    w2_eff = branch_reduce(w2, axis=0).T               # (T, A)  lane-dense rows
    b2_eff = branch_reduce(b2, axis=0)                 # (1, T)
    wa2_row = wa2.reshape(1, A)                        # (1, A)  lane-dense row
    return (wmix, bmix, wa1, ba1, wa2_row, ba2, w1_eff, b1_eff, w2_eff, b2_eff)


@jax.jit
def custom_model_2_head(x, folded_params):
    """x: (B, NL, S, H) stacked hidden states. Returns (B, T)."""
    (wmix, bmix, wa1, ba1, wa2_row, ba2,
     w1_eff, b1_eff, w2_eff, b2_eff) = folded_params

    # Present x as (NL, B*S, H) so mixing lands directly in the matmul layout.
    x_flat = jnp.transpose(x, (1, 0, 2, 3)).reshape(NL, M, H)

    smem = pl.BlockSpec(memory_space=pltpu.MemorySpace.SMEM)

    out = pl.pallas_call(
        head_kernel,
        out_shape=jax.ShapeDtypeStruct((OUT_R, OUT_C), jnp.float32),
        grid=(1,),
        in_specs=[
            pl.BlockSpec((NL, M, H), lambda i: (0, 0, 0)),  # hidden states
            smem,                                           # wmix (NL,)
            smem,                                           # bmix (1,)
            pl.BlockSpec((H, A), lambda i: (0, 0)),         # attn W1^T
            pl.BlockSpec((1, A), lambda i: (0, 0)),         # attn b1
            pl.BlockSpec((1, A), lambda i: (0, 0)),         # attn W2 row (lane-dense)
            smem,                                           # attn b2 (1,)
            pl.BlockSpec((H, A), lambda i: (0, 0)),         # ff1 weight (folded)
            pl.BlockSpec((1, A), lambda i: (0, 0)),         # ff1 bias (folded)
            pl.BlockSpec((T, A), lambda i: (0, 0)),         # ff2 weight (folded, lane-dense)
            pl.BlockSpec((1, T), lambda i: (0, 0)),         # ff2 bias (folded)
        ],
        out_specs=pl.BlockSpec((OUT_R, OUT_C), lambda i: (0, 0)),
        compiler_params=pltpu.CompilerParams(
            dimension_semantics=("arbitrary",)),
    )(x_flat, wmix, bmix, wa1, ba1, wa2_row, ba2,
      w1_eff, b1_eff, w2_eff, b2_eff)

    return out[:B, :T]


def make_params(key):
    """Deterministic init: weights ~ N(0, initializer_range), biases = 0."""
    ks = jax.random.split(key, 8)
    std = INIT_RANGE
    wmix = std * jax.random.normal(ks[0], (NL,), jnp.float32)          # Linear(NL,1).weight
    bmix = jnp.zeros((1,), jnp.float32)
    wa1 = std * jax.random.normal(ks[1], (H, A), jnp.float32)          # Linear(H,512).weight^T
    ba1 = jnp.zeros((1, A), jnp.float32)
    wa2 = std * jax.random.normal(ks[2], (A, 1), jnp.float32)          # Linear(512,1).weight^T
    ba2 = jnp.zeros((1,), jnp.float32)
    w1 = std * jax.random.normal(ks[3], (N_DROP, H, A), jnp.float32)   # Dropout_Linear #1
    b1 = jnp.zeros((N_DROP, 1, A), jnp.float32)
    w2 = std * jax.random.normal(ks[4], (N_DROP, A, T), jnp.float32)   # Dropout_Linear #2
    b2 = jnp.zeros((N_DROP, 1, T), jnp.float32)
    return (wmix, bmix, wa1, ba1, wa2, ba2, w1, b1, w2, b2)


def reference(x, params):
    """Pure-JAX reference with the original per-branch parameters."""
    wmix, bmix, wa1, ba1, wa2, ba2, w1, b1, w2, b2 = params
    mixed = jnp.einsum("blsh,l->bsh", x, wmix) + bmix[0]           # (B,S,H)
    a1 = jnp.tanh(mixed @ wa1 + ba1)                               # (B,S,A)
    logits = a1 @ wa2 + ba2[0]                                     # (B,S,1)
    w = jax.nn.softmax(logits, axis=1)
    feat = jnp.sum(w * mixed, axis=1)                              # (B,H)
    h1 = sum(feat @ w1[i] + b1[i] for i in range(N_DROP))
    if MSD_AVERAGE:
        h1 = h1 / N_DROP
    h = jnp.tanh(h1)
    o = sum(h @ w2[i] + b2[i] for i in range(N_DROP))
    if MSD_AVERAGE:
        o = o / N_DROP
    return jax.nn.sigmoid(o) if APPLY_SIGMOID else o               # (B,T)


if __name__ == "__main__":
    key = jax.random.PRNGKey(0)
    kx, kp = jax.random.split(key)
    x = jax.random.normal(kx, (B, NL, S, H), jnp.float32)
    params = make_params(kp)

    # One-time eval-mode parameter folding (outside the per-call path).
    folded = fold_params(params)
    folded = jax.tree_util.tree_map(jax.block_until_ready, folded)

    out = custom_model_2_head(x, folded)
    out = jax.block_until_ready(out)

    ref = jax.block_until_ready(reference(x, params))
    assert out.shape == (B, T), out.shape
    assert jnp.max(jnp.abs(out - ref)) < 1e-3, "mismatch vs reference"

    print("KERNEL_OK")
</pallas_src>

<mosaic_0001>
module attributes {stable_mosaic.version = 11 : i64} {
  func.func @head_kernel(%arg0: i32, %arg1: memref<6x16x32xf32, #tpu.memory_space<vmem>>, %arg2: memref<6xf32, #tpu.memory_space<smem>>, %arg3: memref<1xf32, #tpu.memory_space<smem>>, %arg4: memref<32x512xf32, #tpu.memory_space<vmem>>, %arg5: memref<1x512xf32, #tpu.memory_space<vmem>>, %arg6: memref<1x512xf32, #tpu.memory_space<vmem>>, %arg7: memref<1xf32, #tpu.memory_space<smem>>, %arg8: memref<32x512xf32, #tpu.memory_space<vmem>>, %arg9: memref<1x512xf32, #tpu.memory_space<vmem>>, %arg10: memref<2x512xf32, #tpu.memory_space<vmem>>, %arg11: memref<1x2xf32, #tpu.memory_space<vmem>>, %arg12: memref<8x128xf32, #tpu.memory_space<vmem>>) attributes {dimension_semantics = [#tpu.dimension_semantics<arbitrary>], iteration_bounds = array<i64: 1>, scalar_prefetch = 0 : i64, scratch_operands = 0 : i64, tpu.core_type = #tpu.core_type<tc>, window_params = [{pipeline_mode = #tpu.pipeline_mode<synchronous>, transform_indices = @transform_0, window_bounds = array<i64: 6, 16, 32>}, {transform_indices = @transform_1, window_bounds = array<i64: 6>}, {transform_indices = @transform_2, window_bounds = array<i64: 1>}, {pipeline_mode = #tpu.pipeline_mode<synchronous>, transform_indices = @transform_3, window_bounds = array<i64: 32, 512>}, {pipeline_mode = #tpu.pipeline_mode<synchronous>, transform_indices = @transform_4, window_bounds = array<i64: 1, 512>}, {pipeline_mode = #tpu.pipeline_mode<synchronous>, transform_indices = @transform_5, window_bounds = array<i64: 1, 512>}, {transform_indices = @transform_6, window_bounds = array<i64: 1>}, {pipeline_mode = #tpu.pipeline_mode<synchronous>, transform_indices = @transform_7, window_bounds = array<i64: 32, 512>}, {pipeline_mode = #tpu.pipeline_mode<synchronous>, transform_indices = @transform_8, window_bounds = array<i64: 1, 512>}, {pipeline_mode = #tpu.pipeline_mode<synchronous>, transform_indices = @transform_9, window_bounds = array<i64: 2, 512>}, {pipeline_mode = #tpu.pipeline_mode<synchronous>, transform_indices = @transform_10, window_bounds = array<i64: 1, 2>}, {pipeline_mode = #tpu.pipeline_mode<synchronous>, transform_indices = @transform_11, window_bounds = array<i64: 8, 128>}]} {
    %c0 = arith.constant 0 : index
    %c0_0 = arith.constant 0 : index
    %c0_1 = arith.constant 0 : index
    %0 = vector.load %arg1[%c0, %c0_0, %c0_1] : memref<6x16x32xf32, #tpu.memory_space<vmem>>, vector<1x16x32xf32>
    %1 = vector.shape_cast %0 : vector<1x16x32xf32> to vector<16x32xf32>
    %c0_2 = arith.constant 0 : index
    %2 = memref.load %arg2[%c0_2] : memref<6xf32, #tpu.memory_space<smem>>
    %3 = vector.broadcast %2 : f32 to vector<16x32xf32>
    %4 = arith.mulf %1, %3 : vector<16x32xf32>
    %c1 = arith.constant 1 : index
    %c0_3 = arith.constant 0 : index
    %c0_4 = arith.constant 0 : index
    %5 = vector.load %arg1[%c1, %c0_3, %c0_4] : memref<6x16x32xf32, #tpu.memory_space<vmem>>, vector<1x16x32xf32>
    %6 = vector.shape_cast %5 : vector<1x16x32xf32> to vector<16x32xf32>
    %c1_5 = arith.constant 1 : index
    %7 = memref.load %arg2[%c1_5] : memref<6xf32, #tpu.memory_space<smem>>
    %8 = vector.broadcast %7 : f32 to vector<16x32xf32>
    %9 = arith.mulf %6, %8 : vector<16x32xf32>
    %10 = arith.addf %4, %9 : vector<16x32xf32>
    %c2 = arith.constant 2 : index
    %c0_6 = arith.constant 0 : index
    %c0_7 = arith.constant 0 : index
    %11 = vector.load %arg1[%c2, %c0_6, %c0_7] : memref<6x16x32xf32, #tpu.memory_space<vmem>>, vector<1x16x32xf32>
    %12 = vector.shape_cast %11 : vector<1x16x32xf32> to vector<16x32xf32>
    %c2_8 = arith.constant 2 : index
    %13 = memref.load %arg2[%c2_8] : memref<6xf32, #tpu.memory_space<smem>>
    %14 = vector.broadcast %13 : f32 to vector<16x32xf32>
    %15 = arith.mulf %12, %14 : vector<16x32xf32>
    %16 = arith.addf %10, %15 : vector<16x32xf32>
    %c3 = arith.constant 3 : index
    %c0_9 = arith.constant 0 : index
    %c0_10 = arith.constant 0 : index
    %17 = vector.load %arg1[%c3, %c0_9, %c0_10] : memref<6x16x32xf32, #tpu.memory_space<vmem>>, vector<1x16x32xf32>
    %18 = vector.shape_cast %17 : vector<1x16x32xf32> to vector<16x32xf32>
    %c3_11 = arith.constant 3 : index
    %19 = memref.load %arg2[%c3_11] : memref<6xf32, #tpu.memory_space<smem>>
    %20 = vector.broadcast %19 : f32 to vector<16x32xf32>
    %21 = arith.mulf %18, %20 : vector<16x32xf32>
    %22 = arith.addf %16, %21 : vector<16x32xf32>
    %c4 = arith.constant 4 : index
    %c0_12 = arith.constant 0 : index
    %c0_13 = arith.constant 0 : index
    %23 = vector.load %arg1[%c4, %c0_12, %c0_13] : memref<6x16x32xf32, #tpu.memory_space<vmem>>, vector<1x16x32xf32>
    %24 = vector.shape_cast %23 : vector<1x16x32xf32> to vector<16x32xf32>
    %c4_14 = arith.constant 4 : index
    %25 = memref.load %arg2[%c4_14] : memref<6xf32, #tpu.memory_space<smem>>
    %26 = vector.broadcast %25 : f32 to vector<16x32xf32>
    %27 = arith.mulf %24, %26 : vector<16x32xf32>
    %28 = arith.addf %22, %27 : vector<16x32xf32>
    %c5 = arith.constant 5 : index
    %c0_15 = arith.constant 0 : index
    %c0_16 = arith.constant 0 : index
    %29 = vector.load %arg1[%c5, %c0_15, %c0_16] : memref<6x16x32xf32, #tpu.memory_space<vmem>>, vector<1x16x32xf32>
    %30 = vector.shape_cast %29 : vector<1x16x32xf32> to vector<16x32xf32>
    %c5_17 = arith.constant 5 : index
    %31 = memref.load %arg2[%c5_17] : memref<6xf32, #tpu.memory_space<smem>>
    %32 = vector.broadcast %31 : f32 to vector<16x32xf32>
    %33 = arith.mulf %30, %32 : vector<16x32xf32>
    %34 = arith.addf %28, %33 : vector<16x32xf32>
    %c0_18 = arith.constant 0 : index
    %35 = memref.load %arg3[%c0_18] : memref<1xf32, #tpu.memory_space<smem>>
    %36 = vector.broadcast %35 : f32 to vector<16x32xf32>
    %37 = arith.addf %34, %36 : vector<16x32xf32>
    %c0_19 = arith.constant 0 : index
    %c0_20 = arith.constant 0 : index
    %38 = vector.load %arg4[%c0_19, %c0_20] : memref<32x512xf32, #tpu.memory_space<vmem>>, vector<32x512xf32>
    %cst = arith.constant dense<0.000000e+00> : vector<16x512xf32>
    %39 = tpu.matmul %37, %38, %cst {dimension_numbers = #tpu.dot_dimension_numbers<[1], [0], [0], [1], [0, 0, 1, 1], [], []>} : vector<16x32xf32>, vector<32x512xf32>, vector<16x512xf32> -> vector<16x512xf32>
    %c0_21 = arith.constant 0 : index
    %c0_22 = arith.constant 0 : index
    %40 = vector.load %arg5[%c0_21, %c0_22] : memref<1x512xf32, #tpu.memory_space<vmem>>, vector<1x512xf32>
    %41 = vector.broadcast %40 : vector<1x512xf32> to vector<16x512xf32>
    %42 = arith.addf %39, %41 : vector<16x512xf32>
    %43 = math.tanh %42 : vector<16x512xf32>
    %c0_23 = arith.constant 0 : index
    %c0_24 = arith.constant 0 : index
    %44 = vector.load %arg6[%c0_23, %c0_24] : memref<1x512xf32, #tpu.memory_space<vmem>>, vector<1x512xf32>
    %45 = vector.broadcast %44 : vector<1x512xf32> to vector<16x512xf32>
    %46 = arith.mulf %43, %45 : vector<16x512xf32>
    %cst_25 = arith.constant dense<0.000000e+00> : vector<16xf32>
    %47 = vector.multi_reduction <add>, %46, %cst_25 [1] : vector<16x512xf32> to vector<16xf32>
    %48 = vector.shape_cast %47 : vector<16xf32> to vector<16x1xf32>
    %c0_26 = arith.constant 0 : index
    %49 = memref.load %arg7[%c0_26] : memref<1xf32, #tpu.memory_space<smem>>
    %50 = vector.broadcast %49 : f32 to vector<16x1xf32>
    %51 = arith.addf %48, %50 : vector<16x1xf32>
    %52 = vector.shape_cast %51 : vector<16x1xf32> to vector<2x8x1xf32>
    %cst_27 = arith.constant dense<0xFF800000> : vector<2x1xf32>
    %53 = vector.multi_reduction <maximumf>, %52, %cst_27 [1] : vector<2x8x1xf32> to vector<2x1xf32>
    %54 = vector.shape_cast %53 : vector<2x1xf32> to vector<2x1x1xf32>
    %55 = vector.broadcast %54 : vector<2x1x1xf32> to vector<2x8x1xf32>
    %56 = arith.subf %52, %55 : vector<2x8x1xf32>
    %57 = math.exp %56 : vector<2x8x1xf32>
    %cst_28 = arith.constant dense<0.000000e+00> : vector<2x1xf32>
    %58 = vector.multi_reduction <add>, %57, %cst_28 [1] : vector<2x8x1xf32> to vector<2x1xf32>
    %59 = vector.shape_cast %58 : vector<2x1xf32> to vector<2x1x1xf32>
    %60 = tpu.reciprocal %59 {approx = true} : vector<2x1x1xf32> -> vector<2x1x1xf32>
    %61 = vector.broadcast %60 : vector<2x1x1xf32> to vector<2x8x1xf32>
    %62 = arith.mulf %57, %61 : vector<2x8x1xf32>
    %63 = vector.shape_cast %37 : vector<16x32xf32> to vector<2x8x32xf32>
    %64 = vector.broadcast %62 : vector<2x8x1xf32> to vector<2x8x32xf32>
    %65 = arith.mulf %64, %63 : vector<2x8x32xf32>
    %cst_29 = arith.constant dense<0.000000e+00> : vector<2x32xf32>
    %66 = vector.multi_reduction <add>, %65, %cst_29 [1] : vector<2x8x32xf32> to vector<2x32xf32>
    %c0_30 = arith.constant 0 : index
    %c0_31 = arith.constant 0 : index
    %67 = vector.load %arg8[%c0_30, %c0_31] : memref<32x512xf32, #tpu.memory_space<vmem>>, vector<32x512xf32>
    %cst_32 = arith.constant dense<0.000000e+00> : vector<2x512xf32>
    %68 = tpu.matmul %66, %67, %cst_32 {dimension_numbers = #tpu.dot_dimension_numbers<[1], [0], [0], [1], [0, 0, 1, 1], [], []>} : vector<2x32xf32>, vector<32x512xf32>, vector<2x512xf32> -> vector<2x512xf32>
    %c0_33 = arith.constant 0 : index
    %c0_34 = arith.constant 0 : index
    %69 = vector.load %arg9[%c0_33, %c0_34] : memref<1x512xf32, #tpu.memory_space<vmem>>, vector<1x512xf32>
    %70 = vector.broadcast %69 : vector<1x512xf32> to vector<2x512xf32>
    %71 = arith.addf %68, %70 : vector<2x512xf32>
    %72 = math.tanh %71 : vector<2x512xf32>
    %73 = vector.shape_cast %72 : vector<2x512xf32> to vector<2x1x512xf32>
    %c0_35 = arith.constant 0 : index
    %c0_36 = arith.constant 0 : index
    %74 = vector.load %arg10[%c0_35, %c0_36] : memref<2x512xf32, #tpu.memory_space<vmem>>, vector<2x512xf32>
    %75 = vector.shape_cast %74 : vector<2x512xf32> to vector<1x2x512xf32>
    %76 = vector.broadcast %73 : vector<2x1x512xf32> to vector<2x2x512xf32>
    %77 = vector.broadcast %75 : vector<1x2x512xf32> to vector<2x2x512xf32>
    %78 = arith.mulf %76, %77 : vector<2x2x512xf32>
    %cst_37 = arith.constant dense<0.000000e+00> : vector<2x2xf32>
    %79 = vector.multi_reduction <add>, %78, %cst_37 [2] : vector<2x2x512xf32> to vector<2x2xf32>
    %c0_38 = arith.constant 0 : index
    %c0_39 = arith.constant 0 : index
    %80 = vector.load %arg11[%c0_38, %c0_39] : memref<1x2xf32, #tpu.memory_space<vmem>>, vector<1x2xf32>
    %81 = vector.broadcast %80 : vector<1x2xf32> to vector<2x2xf32>
    %82 = arith.addf %79, %81 : vector<2x2xf32>
    %83 = arith.negf %82 : vector<2x2xf32>
    %84 = math.exp %83 : vector<2x2xf32>
    %cst_40 = arith.constant 1.000000e+00 : f32
    %85 = vector.broadcast %cst_40 : f32 to vector<2x2xf32>
    %86 = arith.addf %85, %84 : vector<2x2xf32>
    %87 = arith.divf %85, %86 : vector<2x2xf32>
    %cst_41 = arith.constant 0.000000e+00 : f32
    %88 = vector.broadcast %cst_41 : f32 to vector<8x128xf32>
    %c0_42 = arith.constant 0 : index
    %c0_43 = arith.constant 0 : index
    %89 = vector.load %arg12[%c0_42, %c0_43] : memref<8x128xf32, #tpu.memory_space<vmem>>, vector<8x128xf32>
    tpu.vector_store %arg12[%c0_42, %c0_43], %88 {strides = array<i32>} : memref<8x128xf32, #tpu.memory_space<vmem>>, vector<8x128xf32>,
    %c0_44 = arith.constant 0 : index
    %c0_45 = arith.constant 0 : index
    %90 = vector.load %arg12[%c0_44, %c0_45] : memref<8x128xf32, #tpu.memory_space<vmem>>, vector<2x2xf32>
    tpu.vector_store %arg12[%c0_44, %c0_45], %87 {strides = array<i32>} : memref<8x128xf32, #tpu.memory_space<vmem>>, vector<2x2xf32>,
    return
  }
  func.func @transform_0(%arg0: i32) -> (i32, i32, i32) {
    %c0_i32 = arith.constant 0 : i32
    %c0_i32_0 = arith.constant 0 : i32
    %c0_i32_1 = arith.constant 0 : i32
    %c0_i32_2 = arith.constant 0 : i32
    return %c0_i32, %c0_i32_0, %c0_i32_1 : i32, i32, i32
  }
  func.func @transform_1(%arg0: i32) -> i32 {
    %c0_i32 = arith.constant 0 : i32
    %c0_i32_0 = arith.constant 0 : i32
    return %c0_i32 : i32
  }
  func.func @transform_2(%arg0: i32) -> i32 {
    %c0_i32 = arith.constant 0 : i32
    %c0_i32_0 = arith.constant 0 : i32
    return %c0_i32 : i32
  }
  func.func @transform_3(%arg0: i32) -> (i32, i32) {
    %c0_i32 = arith.constant 0 : i32
    %c0_i32_0 = arith.constant 0 : i32
    %c0_i32_1 = arith.constant 0 : i32
    return %c0_i32, %c0_i32_0 : i32, i32
  }
  func.func @transform_4(%arg0: i32) -> (i32, i32) {
    %c0_i32 = arith.constant 0 : i32
    %c0_i32_0 = arith.constant 0 : i32
    %c0_i32_1 = arith.constant 0 : i32
    return %c0_i32, %c0_i32_0 : i32, i32
  }
  func.func @transform_5(%arg0: i32) -> (i32, i32) {
    %c0_i32 = arith.constant 0 : i32
    %c0_i32_0 = arith.constant 0 : i32
    %c0_i32_1 = arith.constant 0 : i32
    return %c0_i32, %c0_i32_0 : i32, i32
  }
  func.func @transform_6(%arg0: i32) -> i32 {
    %c0_i32 = arith.constant 0 : i32
    %c0_i32_0 = arith.constant 0 : i32
    return %c0_i32 : i32
  }
  func.func @transform_7(%arg0: i32) -> (i32, i32) {
    %c0_i32 = arith.constant 0 : i32
    %c0_i32_0 = arith.constant 0 : i32
    %c0_i32_1 = arith.constant 0 : i32
    return %c0_i32, %c0_i32_0 : i32, i32
  }
  func.func @transform_8(%arg0: i32) -> (i32, i32) {
    %c0_i32 = arith.constant 0 : i32
    %c0_i32_0 = arith.constant 0 : i32
    %c0_i32_1 = arith.constant 0 : i32
    return %c0_i32, %c0_i32_0 : i32, i32
  }
  func.func @transform_9(%arg0: i32) -> (i32, i32) {
    %c0_i32 = arith.constant 0 : i32
    %c0_i32_0 = arith.constant 0 : i32
    %c0_i32_1 = arith.constant 0 : i32
    return %c0_i32, %c0_i32_0 : i32, i32
  }
  func.func @transform_10(%arg0: i32) -> (i32, i32) {
    %c0_i32 = arith.constant 0 : i32
    %c0_i32_0 = arith.constant 0 : i32
    %c0_i32_1 = arith.constant 0 : i32
    return %c0_i32, %c0_i32_0 : i32, i32
  }
  func.func @transform_11(%arg0: i32) -> (i32, i32) {
    %c0_i32 = arith.constant 0 : i32
    %c0_i32_0 = arith.constant 0 : i32
    %c0_i32_1 = arith.constant 0 : i32
    return %c0_i32, %c0_i32_0 : i32, i32
  }
}

</mosaic_0001>

<llo_original>
// kernel: custom_model_2_head.1
$region0: #{custom_model_2_head.1}
  #allocation0 [shape = 'u32[]', space=smem, size = 0x4, offset = 0x4, fixed_abs, tag = 'smem constant byte address 0x4 - core index']
  #allocation1 [shape = 'u32[144,128]{1,0:T(1,128)}', space=vmem, size = 0x12000, scoped, tag = 'internal scratch']
  #allocation2 [shape = 'f32[1]{0:T(128)S(6)}', space=smem, size = 0x200, scoped, tag = 'scoped memory for custom_model_2_head.1']
  #allocation3 [shape = 'f32[1]{0:T(128)S(6)}', space=smem, size = 0x200, scoped, tag = 'scoped memory for custom_model_2_head.1']
  %s0 = inlined_call_operand.vmem [shape: f32[6,16,32], index: 0, kind: input, shape index: {}]
  %s1 = inlined_call_operand.vmem [shape: f32[6], index: 1, kind: input, shape index: {}]
  %s2 = inlined_call_operand.<no memory space> [shape: f32[1], index: 2, kind: input, shape index: {}]
  %s3 = inlined_call_operand.vmem [shape: f32[32,512], index: 3, kind: input, shape index: {}]
  %s4 = inlined_call_operand.vmem [shape: f32[1,512], index: 4, kind: input, shape index: {}]
  %s5 = inlined_call_operand.vmem [shape: f32[1,512], index: 5, kind: input, shape index: {}]
  %s6 = inlined_call_operand.<no memory space> [shape: f32[1], index: 6, kind: input, shape index: {}]
  %s7 = inlined_call_operand.hbm [shape: f32[32,512], index: 7, kind: input, shape index: {}]
  %s8 = inlined_call_operand.vmem [shape: f32[1,512], index: 8, kind: input, shape index: {}]
  %s9 = inlined_call_operand.vmem [shape: f32[2,512], index: 9, kind: input, shape index: {}]
  %s10 = inlined_call_operand.vmem [shape: f32[1,2], index: 10, kind: input, shape index: {}]
  %s11 = inlined_call_operand.vmem [shape: f32[8,128], index: 11, kind: output, shape index: {}]
  %s12 = sld [smem:[#allocation0]]
  $region62: #{custom_model_2_head.1} parent=0
    _
  %s14 = ssub.s32 1, %s12
  %s15 = scalar_select 0, %s14, %s12
  %16 = sst [smem:[#allocation2]] %s2
  %17 = sst [smem:[#allocation3]] %s6
  $region1: #{custom_model_2_head.1} parent=0
    #allocation4 [shape = 'u8[512]{0}', space=smem, size = 0x200, scoped, tag = 'input window, operand 1, single buffered']
    #allocation5 [shape = 's32[1]{0}', space=sflag, size = 0x4, scoped, tag = 'scoped memory for custom_model_2_head.1']
    #allocation6 [shape = 's32[1]{0}', space=sflag, size = 0x4, scoped, tag = 'scoped memory for custom_model_2_head.1']
    #allocation7 [shape = 'u8[65536]{0}', space=vmem, size = 0x10000, scoped, tag = 'input window, operand 7, single buffered']
    %18 = vsyncpa [#allocation6], 0
    %19 = vsyncpa [#allocation5], 0
    // Predicated region
    $region2: #{custom_model_2_head.1} parent=1 // pred_check
      _
    $region3: #{custom_model_2_head.1} parent=1 // pred_check_branch
      %21 = sbr.rel (0) target = $region5
    $region4: #{custom_model_2_head.1} parent=1 // pred_region
      _
    $region5: #{custom_model_2_head.1} parent=1 // pred_fallthru
      _
    // Predicated region
    $region6: #{custom_model_2_head.1} parent=1 // pred_check
      _
    $region7: #{custom_model_2_head.1} parent=1 // pred_check_branch
      %23 = sbr.rel (0) target = $region9
    $region8: #{custom_model_2_head.1} parent=1 // pred_region
      %s25 = ssub.s32 16, 16
      %26 = vsyncadd [#allocation6], %s25
      %s28 = sshll.u32 %s1, 4
      %s29 = int_to_ptr.vmem [resolvable:$true] %s28
      %31 = dma.vmem_to_smem %s29, 16, [#allocation4], [#allocation6]
    $region9: #{custom_model_2_head.1} parent=1 // pred_fallthru
      _
    // Predicated region
    $region10: #{custom_model_2_head.1} parent=1 // pred_check
      _
    $region11: #{custom_model_2_head.1} parent=1 // pred_check_branch
      %33 = sbr.rel (0) target = $region13
    $region12: #{custom_model_2_head.1} parent=1 // pred_region
      _
    $region13: #{custom_model_2_head.1} parent=1 // pred_fallthru
      _
    // Predicated region
    $region14: #{custom_model_2_head.1} parent=1 // pred_check
      _
    $region15: #{custom_model_2_head.1} parent=1 // pred_check_branch
      %35 = sbr.rel (0) target = $region17
    $region16: #{custom_model_2_head.1} parent=1 // pred_region
      _
    $region17: #{custom_model_2_head.1} parent=1 // pred_fallthru
      _
    // Predicated region
    $region18: #{custom_model_2_head.1} parent=1 // pred_check
      _
    $region19: #{custom_model_2_head.1} parent=1 // pred_check_branch
      %37 = sbr.rel (0) target = $region21
    $region20: #{custom_model_2_head.1} parent=1 // pred_region
      _
    $region21: #{custom_model_2_head.1} parent=1 // pred_fallthru
      _
    // Predicated region
    $region22: #{custom_model_2_head.1} parent=1 // pred_check
      _
    $region23: #{custom_model_2_head.1} parent=1 // pred_check_branch
      %39 = sbr.rel (0) target = $region25
    $region24: #{custom_model_2_head.1} parent=1 // pred_region
      _
    $region25: #{custom_model_2_head.1} parent=1 // pred_fallthru
      _
    // Predicated region
    $region26: #{custom_model_2_head.1} parent=1 // pred_check
      _
    $region27: #{custom_model_2_head.1} parent=1 // pred_check_branch
      %41 = sbr.rel (0) target = $region29
    $region28: #{custom_model_2_head.1} parent=1 // pred_region
      _
    $region29: #{custom_model_2_head.1} parent=1 // pred_fallthru
      _
    // Predicated region
    $region30: #{custom_model_2_head.1} parent=1 // pred_check
      _
    $region31: #{custom_model_2_head.1} parent=1 // pred_check_branch
      %43 = sbr.rel (0) target = $region33
    $region32: #{custom_model_2_head.1} parent=1 // pred_region
      %s45 = ssub.s32 2048, 2048
      %46 = vsyncadd [#allocation5], %s45
      %s47 = sshll.u32 [#allocation7], 4
      %s48 = int_to_ptr.vmem [resolvable:$true] %s47
      %53 = dma.hbm_to_vmem [thread:$0]  %s7, 2048, %s48, [#allocation5], 512, 512, 32
    $region33: #{custom_model_2_head.1} parent=1 // pred_fallthru
      _
    // Predicated region
    $region34: #{custom_model_2_head.1} parent=1 // pred_check
      _
    $region35: #{custom_model_2_head.1} parent=1 // pred_check_branch
      %55 = sbr.rel (0) target = $region37
    $region36: #{custom_model_2_head.1} parent=1 // pred_region
      _
    $region37: #{custom_model_2_head.1} parent=1 // pred_fallthru
      _
    // Predicated region
    $region38: #{custom_model_2_head.1} parent=1 // pred_check
      _
    $region39: #{custom_model_2_head.1} parent=1 // pred_check_branch
      %57 = sbr.rel (0) target = $region41
    $region40: #{custom_model_2_head.1} parent=1 // pred_region
      _
    $region41: #{custom_model_2_head.1} parent=1 // pred_fallthru
      _
    // Predicated region
    $region42: #{custom_model_2_head.1} parent=1 // pred_check
      _
    $region43: #{custom_model_2_head.1} parent=1 // pred_check_branch
      %59 = sbr.rel (0) target = $region45
    $region44: #{custom_model_2_head.1} parent=1 // pred_region
      _
    $region45: #{custom_model_2_head.1} parent=1 // pred_fallthru
      _
    // Predicated region
    $region46: #{custom_model_2_head.1} parent=1 // pred_check
      _
    $region47: #{custom_model_2_head.1} parent=1 // pred_check_branch
      %61 = sbr.rel (0) target = $region49
    $region48: #{custom_model_2_head.1} parent=1 // pred_region
      %62 = dma.done [#allocation6], 16
    $region49: #{custom_model_2_head.1} parent=1 // pred_fallthru
      _
    // Predicated region
    $region50: #{custom_model_2_head.1} parent=1 // pred_check
      _
    $region51: #{custom_model_2_head.1} parent=1 // pred_check_branch
      %64 = sbr.rel (0) target = $region53
    $region52: #{custom_model_2_head.1} parent=1 // pred_region
      %65 = dma.done [#allocation5], 2048
    $region53: #{custom_model_2_head.1} parent=1 // pred_fallthru
      _
    %66 = sfence
    %v67 = vld [vmem:[%s0] sm:$0xff]
    %v68 = vld [vmem:[%s0 + $0x8] sm:$0xff]
    %s69 = sld [smem:[#allocation4]]
    %v70 = vstv %s69
    %v71 = vmul.f32 %v67, %v70
    %v72 = vmul.f32 %v68, %v70
    %s73 = scalar_lea.vmem %s0, 16
    %v74 = vld [vmem:[%s73] sm:$0xff]
    %v75 = vld [vmem:[%s73 + $0x8] sm:$0xff]
    %s76 = sld [smem:[#allocation4 + $0x1]]
    %v77 = vstv %s76
    %v78 = vmul.f32 %v74, %v77
    %v79 = vmul.f32 %v75, %v77
    %v80 = vadd.f32 %v71, %v78
    %v81 = vadd.f32 %v72, %v79
    %s82 = scalar_lea.vmem %s0, 32
    %v83 = vld [vmem:[%s82] sm:$0xff]
    %v84 = vld [vmem:[%s82 + $0x8] sm:$0xff]
    %s85 = sld [smem:[#allocation4 + $0x2]]
    %v86 = vstv %s85
    %v87 = vmul.f32 %v83, %v86
    %v88 = vmul.f32 %v84, %v86
    %v89 = vadd.f32 %v80, %v87
    %v90 = vadd.f32 %v81, %v88
    %s91 = scalar_lea.vmem %s0, 48
    %v92 = vld [vmem:[%s91] sm:$0xff]
    %v93 = vld [vmem:[%s91 + $0x8] sm:$0xff]
    %s94 = sld [smem:[#allocation4 + $0x3]]
    %v95 = vstv %s94
    %v96 = vmul.f32 %v92, %v95
    %v97 = vmul.f32 %v93, %v95
    %v98 = vadd.f32 %v89, %v96
    %v99 = vadd.f32 %v90, %v97
    %s100 = scalar_lea.vmem %s0, 64
    %v101 = vld [vmem:[%s100] sm:$0xff]
    %v102 = vld [vmem:[%s100 + $0x8] sm:$0xff]
    %s103 = sld [smem:[#allocation4 + $0x4]]
    %v104 = vstv %s103
    %v105 = vmul.f32 %v101, %v104
    %v106 = vmul.f32 %v102, %v104
    %v107 = vadd.f32 %v98, %v105
    %v108 = vadd.f32 %v99, %v106
    %s109 = scalar_lea.vmem %s0, 80
    %v110 = vld [vmem:[%s109] sm:$0xff]
    %v111 = vld [vmem:[%s109 + $0x8] sm:$0xff]
    %s112 = sld [smem:[#allocation4 + $0x5]]
    %v113 = vstv %s112
    %v114 = vmul.f32 %v110, %v113
    %v115 = vmul.f32 %v111, %v113
    %v116 = vadd.f32 %v107, %v114
    %v117 = vadd.f32 %v108, %v115
    %s118 = sld [smem:[#allocation2]]
    %v119 = vstv %s118
    %v120 = vadd.f32 %v116, %v119
    %v121 = vadd.f32 %v117, %v119
    %v122 = vld [vmem:[%s3] sm:$0xff]
    %v123 = vld [vmem:[%s3 + $0x8] sm:$0xff]
    %v124 = vld [vmem:[%s3 + $0x10] sm:$0xff]
    %v125 = vld [vmem:[%s3 + $0x18] sm:$0xff]
    %v126 = vld [vmem:[%s3 + $0x20] sm:$0xff]
    %v127 = vld [vmem:[%s3 + $0x28] sm:$0xff]
    %v128 = vld [vmem:[%s3 + $0x30] sm:$0xff]
    %v129 = vld [vmem:[%s3 + $0x38] sm:$0xff]
    %v130 = vld [vmem:[%s3 + $0x40] sm:$0xff]
    %v131 = vld [vmem:[%s3 + $0x48] sm:$0xff]
    %v132 = vld [vmem:[%s3 + $0x50] sm:$0xff]
    %v133 = vld [vmem:[%s3 + $0x58] sm:$0xff]
    %v134 = vld [vmem:[%s3 + $0x60] sm:$0xff]
    %v135 = vld [vmem:[%s3 + $0x68] sm:$0xff]
    %v136 = vld [vmem:[%s3 + $0x70] sm:$0xff]
    %v137 = vld [vmem:[%s3 + $0x78] sm:$0xff]
    %v138 = vld [vmem:[%s4] sm:$0xf]
    %v140 = vlaneseq
    %v141 = vshrl.u32 %v140, 7
    %v142 = vsub.s32 0, %v141
    %v143 = vrot.slane %v138, %v142
    %v144 = vlaneseq
    %v145 = vshrl.u32 %v144, 7
    %v146 = vsub.s32 1, %v145
    %v147 = vrot.slane %v138, %v146
    %v148 = vlaneseq
    %v149 = vshrl.u32 %v148, 7
    %v150 = vsub.s32 2, %v149
    %v151 = vrot.slane %v138, %v150
    %v152 = vlaneseq
    %v153 = vshrl.u32 %v152, 7
    %v154 = vsub.s32 3, %v153
    %v155 = vrot.slane %v138, %v154
    %vm160 = vcmask 261120
    %v162 = vsel %vm160, %v120, 0
    %v165 = vsel %vm160, %v121, 0
    %167 = vmatprep.subr.mxu0 0.0
    %168 = vmatpush1.msra.mxu0 0.0
    %169 = vmatprep.subr.mxu0 0.0
    %170 = vmatpush1.msra.mxu0 0.0
    %171 = vmatprep.subr.mxu0 0.0
    %172 = vmatpush1.msra.mxu0 0.0
    %173 = vmatprep.subr.mxu0 0.0
    %174 = vmatpush1.msra.mxu0 0.0
    %175 = vmatprep.subr.mxu0 0.0
    %176 = vmatpush1.msra.mxu0 0.0
    %177 = vmatprep.subr.mxu0 0.0
    %178 = vmatpush1.msra.mxu0 0.0
    %179 = vmatprep.subr.mxu0 0.0
    %180 = vmatpush1.msra.mxu0 0.0
    %181 = vmatprep.subr.mxu0 0.0
    %182 = vmatpush1.msra.mxu0 0.0
    %183 = vmatprep.subr.mxu0 0.0
    %184 = vmatpush1.msra.mxu0 0.0
    %185 = vmatprep.subr.mxu0 0.0
    %186 = vmatpush1.msra.mxu0 0.0
    %187 = vmatprep.subr.mxu0 0.0
    %188 = vmatpush1.msra.mxu0 0.0
    %189 = vmatprep.subr.mxu0 0.0
    %190 = vmatpush1.msra.mxu0 0.0
    %191 = vmatprep.subr.mxu0 %v135
    %192 = vmatpush1.msra.mxu0 %v134
    %193 = vmatprep.subr.mxu0 %v131
    %194 = vmatpush1.msra.mxu0 %v130
    %195 = vmatprep.subr.mxu0 %v127
    %196 = vmatpush1.msra.mxu0 %v126
    %197 = vmatprep.subr.mxu0 %v123
    %198 = vmatpush1.msra.mxu0 %v122
    %199 = vmatprep.subr.mxu0 0.0
    %200 = vmatpush2.msra.mxu0 0.0
    %201 = vmatprep.subr.mxu0 0.0
    %202 = vmatpush2.msra.mxu0 0.0
    %203 = vmatprep.subr.mxu0 0.0
    %204 = vmatpush2.msra.mxu0 0.0
    %205 = vmatprep.subr.mxu0 0.0
    %206 = vmatpush2.msra.mxu0 0.0
    %207 = vmatprep.subr.mxu0 0.0
    %208 = vmatpush2.msra.mxu0 0.0
    %209 = vmatprep.subr.mxu0 0.0
    %210 = vmatpush2.msra.mxu0 0.0
    %211 = vmatprep.subr.mxu0 0.0
    %212 = vmatpush2.msra.mxu0 0.0
    %213 = vmatprep.subr.mxu0 0.0
    %214 = vmatpush2.msra.mxu0 0.0
    %215 = vmatprep.subr.mxu0 0.0
    %216 = vmatpush2.msra.mxu0 0.0
    %217 = vmatprep.subr.mxu0 0.0
    %218 = vmatpush2.msra.mxu0 0.0
    %219 = vmatprep.subr.mxu0 0.0
    %220 = vmatpush2.msra.mxu0 0.0
    %221 = vmatprep.subr.mxu0 0.0
    %222 = vmatpush2.msra.mxu0 0.0
    %223 = vmatprep.subr.mxu0 0.0
    %224 = vmatpush2.msra.mxu0 0.0
    %225 = vmatprep.subr.mxu0 0.0
    %226 = vmatpush2.msra.mxu0 0.0
    %227 = vmatprep.subr.mxu0 0.0
    %228 = vmatpush2.msra.mxu0 0.0
    %229 = vmatprep.subr.mxu0 0.0
    %230 = vmatpush2.msra.mxu0 0.0
    %231 = vmatprep.mubr.f32.mxu0 0.0
    %232 = vmatmul.mubr.f32.gmra.mxu0 %v162
    %v233 = vpop.f32.mrf.mxu0
    %v234 = vadd.f32 %v143, %v233
    %v235 = vpop.f32.mrf.mxu0
    %v236 = vadd.f32 %v147, %v235
    %237 = vmatprep.mubr.f32.mxu0 0.0
    %238 = vmatmul.mubr.f32.gmra.mxu0 %v165
    %v239 = vpop.f32.mrf.mxu0
    %v240 = vadd.f32 %v143, %v239
    %v241 = vpop.f32.mrf.mxu0
    %v242 = vadd.f32 %v147, %v241
    %243 = vdwg.mxu0
    %244 = vmatprep.subr.mxu0 0.0
    %245 = vmatpush1.msra.mxu0 0.0
    %246 = vmatprep.subr.mxu0 0.0
    %247 = vmatpush1.msra.mxu0 0.0
    %248 = vmatprep.subr.mxu0 0.0
    %249 = vmatpush1.msra.mxu0 0.0
    %250 = vmatprep.subr.mxu0 0.0
    %251 = vmatpush1.msra.mxu0 0.0
    %252 = vmatprep.subr.mxu0 0.0
    %253 = vmatpush1.msra.mxu0 0.0
    %254 = vmatprep.subr.mxu0 0.0
    %255 = vmatpush1.msra.mxu0 0.0
    %256 = vmatprep.subr.mxu0 0.0
    %257 = vmatpush1.msra.mxu0 0.0
    %258 = vmatprep.subr.mxu0 0.0
    %259 = vmatpush1.msra.mxu0 0.0
    %260 = vmatprep.subr.mxu0 0.0
    %261 = vmatpush1.msra.mxu0 0.0
    %262 = vmatprep.subr.mxu0 0.0
    %263 = vmatpush1.msra.mxu0 0.0
    %264 = vmatprep.subr.mxu0 0.0
    %265 = vmatpush1.msra.mxu0 0.0
    %266 = vmatprep.subr.mxu0 0.0
    %267 = vmatpush1.msra.mxu0 0.0
    %268 = vmatprep.subr.mxu0 %v137
    %269 = vmatpush1.msra.mxu0 %v136
    %270 = vmatprep.subr.mxu0 %v133
    %271 = vmatpush1.msra.mxu0 %v132
    %272 = vmatprep.subr.mxu0 %v129
    %273 = vmatpush1.msra.mxu0 %v128
    %274 = vmatprep.subr.mxu0 %v125
    %275 = vmatpush1.msra.mxu0 %v124
    %276 = vmatprep.subr.mxu0 0.0
    %277 = vmatpush2.msra.mxu0 0.0
    %278 = vmatprep.subr.mxu0 0.0
    %279 = vmatpush2.msra.mxu0 0.0
    %280 = vmatprep.subr.mxu0 0.0
    %281 = vmatpush2.msra.mxu0 0.0
    %282 = vmatprep.subr.mxu0 0.0
    %283 = vmatpush2.msra.mxu0 0.0
    %284 = vmatprep.subr.mxu0 0.0
    %285 = vmatpush2.msra.mxu0 0.0
    %286 = vmatprep.subr.mxu0 0.0
    %287 = vmatpush2.msra.mxu0 0.0
    %288 = vmatprep.subr.mxu0 0.0
    %289 = vmatpush2.msra.mxu0 0.0
    %290 = vmatprep.subr.mxu0 0.0
    %291 = vmatpush2.msra.mxu0 0.0
    %292 = vmatprep.subr.mxu0 0.0
    %293 = vmatpush2.msra.mxu0 0.0
    %294 = vmatprep.subr.mxu0 0.0
    %295 = vmatpush2.msra.mxu0 0.0
    %296 = vmatprep.subr.mxu0 0.0
    %297 = vmatpush2.msra.mxu0 0.0
    %298 = vmatprep.subr.mxu0 0.0
    %299 = vmatpush2.msra.mxu0 0.0
    %300 = vmatprep.subr.mxu0 0.0
    %301 = vmatpush2.msra.mxu0 0.0
    %302 = vmatprep.subr.mxu0 0.0
    %303 = vmatpush2.msra.mxu0 0.0
    %304 = vmatprep.subr.mxu0 0.0
    %305 = vmatpush2.msra.mxu0 0.0
    %306 = vmatprep.subr.mxu0 0.0
    %307 = vmatpush2.msra.mxu0 0.0
    %308 = vmatprep.mubr.f32.mxu0 0.0
    %309 = vmatmul.mubr.f32.gmra.mxu0 %v162
    %v310 = vpop.f32.mrf.mxu0
    %v311 = vadd.f32 %v151, %v310
    %v312 = vpop.f32.mrf.mxu0
    %v313 = vadd.f32 %v155, %v312
    %314 = vmatprep.mubr.f32.mxu0 0.0
    %315 = vmatmul.mubr.f32.gmra.mxu0 %v165
    %v316 = vpop.f32.mrf.mxu0
    %v317 = vadd.f32 %v151, %v316
    %v318 = vpop.f32.mrf.mxu0
    %v319 = vadd.f32 %v155, %v318
    %320 = vdwg.mxu0
    %v321 = vtanh.pop %v234
    %v322 = vtanh.pop %v236
    %v323 = vtanh.pop %v311
    %v324 = vtanh.pop %v313
    %v325 = vtanh.pop %v240
    %v326 = vtanh.pop %v242
    %v327 = vtanh.pop %v317
    %v328 = vtanh.pop %v319
    %v329 = vld [vmem:[%s5] sm:$0xf]
    %v331 = vlaneseq
    %v332 = vshrl.u32 %v331, 7
    %v333 = vsub.s32 0, %v332
    %v334 = vrot.slane %v329, %v333
    %v335 = vlaneseq
    %v336 = vshrl.u32 %v335, 7
    %v337 = vsub.s32 1, %v336
    %v338 = vrot.slane %v329, %v337
    %v339 = vlaneseq
    %v340 = vshrl.u32 %v339, 7
    %v341 = vsub.s32 2, %v340
    %v342 = vrot.slane %v329, %v341
    %v343 = vlaneseq
    %v344 = vshrl.u32 %v343, 7
    %v345 = vsub.s32 3, %v344
    %v346 = vrot.slane %v329, %v345
    %v351 = vmul.f32 %v321, %v334
    %v352 = vmul.f32 %v322, %v338
    %v353 = vmul.f32 %v323, %v342
    %v354 = vmul.f32 %v324, %v346
    %v355 = vmul.f32 %v325, %v334
    %v356 = vmul.f32 %v326, %v338
    %v357 = vmul.f32 %v327, %v342
    %v358 = vmul.f32 %v328, %v346
    %v359 = vadd.f32 %v351, %v352
    %v360 = vadd.f32 %v359, %v353
    %v361 = vadd.f32 %v360, %v354
    %362 = vadd.xlane.f32.xlu0 %v361
    %v363 = vpop.xlane.xlu0 %362
    %v364 = vadd.f32 %v355, %v356
    %v365 = vadd.f32 %v364, %v357
    %v366 = vadd.f32 %v365, %v358
    %367 = vadd.xlane.f32.xlu0 %v366
    %v368 = vpop.xlane.xlu0 %367
    %s369 = sld [smem:[#allocation3]]
    %v370 = vstv %s369
    %v371 = vadd.f32 %v363, %v370
    %v372 = vadd.f32 %v368, %v370
    %v373 = vrot.slane %v371, 4
    %v374 = vmax.f32 %v371, %v373
    %v375 = vrot.slane %v374, 2
    %v376 = vmax.f32 %v374, %v375
    %v377 = vrot.slane %v376, 1
    %v378 = vmax.f32 %v376, %v377
    %v379 = vrot.slane %v372, 4
    %v380 = vmax.f32 %v372, %v379
    %v381 = vrot.slane %v380, 2
    %v382 = vmax.f32 %v380, %v381
    %v383 = vrot.slane %v382, 1
    %v384 = vmax.f32 %v382, %v383
    %v385 = vsub.f32 %v371, %v378
    %v386 = vsub.f32 %v372, %v384
    %v387 = vmul.f32 %v385, 1.442695
    %v388 = vpow.pop %v387
    %v389 = vmul.f32 %v386, 1.442695
    %v390 = vpow.pop %v389
    %v391 = vrot.slane %v388, 4
    %v392 = vadd.f32 %v388, %v391
    %v393 = vrot.slane %v392, 2
    %v394 = vadd.f32 %v392, %v393
    %v395 = vrot.slane %v394, 1
    %v396 = vadd.f32 %v394, %v395
    %v397 = vrot.slane %v390, 4
    %v398 = vadd.f32 %v390, %v397
    %v399 = vrot.slane %v398, 2
    %v400 = vadd.f32 %v398, %v399
    %v401 = vrot.slane %v400, 1
    %v402 = vadd.f32 %v400, %v401
    %v403 = vrcp.pop %v396
    %v404 = vrcp.pop %v402
    %v405 = vmul.f32 %v388, %v403
    %v406 = vmul.f32 %v390, %v404
    %v407 = vmul.f32 %v405, %v120
    %v408 = vmul.f32 %v406, %v121
    %v409 = vsel %vm160, %v407, 0.0
    %v410 = vrot.slane %v409, 4
    %v411 = vadd.f32 %v409, %v410
    %v412 = vrot.slane %v411, 2
    %v413 = vadd.f32 %v411, %v412
    %v414 = vrot.slane %v413, 1
    %v415 = vadd.f32 %v413, %v414
    %v416 = vsel %vm160, %v408, 0.0
    %v417 = vrot.slane %v416, 4
    %v418 = vadd.f32 %v416, %v417
    %v419 = vrot.slane %v418, 2
    %v420 = vadd.f32 %v418, %v419
    %v421 = vrot.slane %v420, 1
    %v422 = vadd.f32 %v420, %v421
    %v423 = vld [vmem:[#allocation7] sm:$0xff]
    %v424 = vld [vmem:[#allocation7 + $0x8] sm:$0xff]
    %v425 = vld [vmem:[#allocation7 + $0x10] sm:$0xff]
    %v426 = vld [vmem:[#allocation7 + $0x18] sm:$0xff]
    %v427 = vld [vmem:[#allocation7 + $0x20] sm:$0xff]
    %v428 = vld [vmem:[#allocation7 + $0x28] sm:$0xff]
    %v429 = vld [vmem:[#allocation7 + $0x30] sm:$0xff]
    %v430 = vld [vmem:[#allocation7 + $0x38] sm:$0xff]
    %v431 = vld [vmem:[#allocation7 + $0x40] sm:$0xff]
    %v432 = vld [vmem:[#allocation7 + $0x48] sm:$0xff]
    %v433 = vld [vmem:[#allocation7 + $0x50] sm:$0xff]
    %v434 = vld [vmem:[#allocation7 + $0x58] sm:$0xff]
    %v435 = vld [vmem:[#allocation7 + $0x60] sm:$0xff]
    %v436 = vld [vmem:[#allocation7 + $0x68] sm:$0xff]
    %v437 = vld [vmem:[#allocation7 + $0x70] sm:$0xff]
    %v438 = vld [vmem:[#allocation7 + $0x78] sm:$0xff]
    %v439 = vld [vmem:[%s8] sm:$0xf]
    %v441 = vlaneseq
    %v442 = vshrl.u32 %v441, 7
    %v443 = vsub.s32 0, %v442
    %v444 = vrot.slane %v439, %v443
    %v445 = vlaneseq
    %v446 = vshrl.u32 %v445, 7
    %v447 = vsub.s32 1, %v446
    %v448 = vrot.slane %v439, %v447
    %v449 = vlaneseq
    %v450 = vshrl.u32 %v449, 7
    %v451 = vsub.s32 2, %v450
    %v452 = vrot.slane %v439, %v451
    %v453 = vlaneseq
    %v454 = vshrl.u32 %v453, 7
    %v455 = vsub.s32 3, %v454
    %v456 = vrot.slane %v439, %v455
    %vm463 = vcmask 1041409
    %v464 = vsel %vm463, %v422, %v415
    %v465 = vsel %vm160, %v464, 0
    %467 = vmatprep.subr.mxu0 0.0
    %468 = vmatpush1.msra.mxu0 0.0
    %469 = vmatprep.subr.mxu0 0.0
    %470 = vmatpush1.msra.mxu0 0.0
    %471 = vmatprep.subr.mxu0 0.0
    %472 = vmatpush1.msra.mxu0 0.0
    %473 = vmatprep.subr.mxu0 0.0
    %474 = vmatpush1.msra.mxu0 0.0
    %475 = vmatprep.subr.mxu0 0.0
    %476 = vmatpush1.msra.mxu0 0.0
    %477 = vmatprep.subr.mxu0 0.0
    %478 = vmatpush1.msra.mxu0 0.0
    %479 = vmatprep.subr.mxu0 0.0
    %480 = vmatpush1.msra.mxu0 0.0
    %481 = vmatprep.subr.mxu0 0.0
    %482 = vmatpush1.msra.mxu0 0.0
    %483 = vmatprep.subr.mxu0 0.0
    %484 = vmatpush1.msra.mxu0 0.0
    %485 = vmatprep.subr.mxu0 0.0
    %486 = vmatpush1.msra.mxu0 0.0
    %487 = vmatprep.subr.mxu0 0.0
    %488 = vmatpush1.msra.mxu0 0.0
    %489 = vmatprep.subr.mxu0 0.0
    %490 = vmatpush1.msra.mxu0 0.0
    %491 = vmatprep.subr.mxu0 %v436
    %492 = vmatpush1.msra.mxu0 %v435
    %493 = vmatprep.subr.mxu0 %v432
    %494 = vmatpush1.msra.mxu0 %v431
    %495 = vmatprep.subr.mxu0 %v428
    %496 = vmatpush1.msra.mxu0 %v427
    %497 = vmatprep.subr.mxu0 %v424
    %498 = vmatpush1.msra.mxu0 %v423
    %499 = vmatprep.subr.mxu0 0.0
    %500 = vmatpush2.msra.mxu0 0.0
    %501 = vmatprep.subr.mxu0 0.0
    %502 = vmatpush2.msra.mxu0 0.0
    %503 = vmatprep.subr.mxu0 0.0
    %504 = vmatpush2.msra.mxu0 0.0
    %505 = vmatprep.subr.mxu0 0.0
    %506 = vmatpush2.msra.mxu0 0.0
    %507 = vmatprep.subr.mxu0 0.0
    %508 = vmatpush2.msra.mxu0 0.0
    %509 = vmatprep.subr.mxu0 0.0
    %510 = vmatpush2.msra.mxu0 0.0
    %511 = vmatprep.subr.mxu0 0.0
    %512 = vmatpush2.msra.mxu0 0.0
    %513 = vmatprep.subr.mxu0 0.0
    %514 = vmatpush2.msra.mxu0 0.0
    %515 = vmatprep.subr.mxu0 0.0
    %516 = vmatpush2.msra.mxu0 0.0
    %517 = vmatprep.subr.mxu0 0.0
    %518 = vmatpush2.msra.mxu0 0.0
    %519 = vmatprep.subr.mxu0 0.0
    %520 = vmatpush2.msra.mxu0 0.0
    %521 = vmatprep.subr.mxu0 0.0
    %522 = vmatpush2.msra.mxu0 0.0
    %523 = vmatprep.subr.mxu0 0.0
    %524 = vmatpush2.msra.mxu0 0.0
    %525 = vmatprep.subr.mxu0 0.0
    %526 = vmatpush2.msra.mxu0 0.0
    %527 = vmatprep.subr.mxu0 0.0
    %528 = vmatpush2.msra.mxu0 0.0
    %529 = vmatprep.subr.mxu0 0.0
    %530 = vmatpush2.msra.mxu0 0.0
    %531 = vmatprep.mubr.f32.mxu0 0.0
    %532 = vmatmul.mubr.f32.gmra.mxu0 %v465
    %v533 = vpop.f32.mrf.mxu0
    %v534 = vadd.f32 %v444, %v533
    %v535 = vpop.f32.mrf.mxu0
    %v536 = vadd.f32 %v448, %v535
    %537 = vdwg.mxu0
    %538 = vmatprep.subr.mxu0 0.0
    %539 = vmatpush1.msra.mxu0 0.0
    %540 = vmatprep.subr.mxu0 0.0
    %541 = vmatpush1.msra.mxu0 0.0
    %542 = vmatprep.subr.mxu0 0.0
    %543 = vmatpush1.msra.mxu0 0.0
    %544 = vmatprep.subr.mxu0 0.0
    %545 = vmatpush1.msra.mxu0 0.0
    %546 = vmatprep.subr.mxu0 0.0
    %547 = vmatpush1.msra.mxu0 0.0
    %548 = vmatprep.subr.mxu0 0.0
    %549 = vmatpush1.msra.mxu0 0.0
    %550 = vmatprep.subr.mxu0 0.0
    %551 = vmatpush1.msra.mxu0 0.0
    %552 = vmatprep.subr.mxu0 0.0
    %553 = vmatpush1.msra.mxu0 0.0
    %554 = vmatprep.subr.mxu0 0.0
    %555 = vmatpush1.msra.mxu0 0.0
    %556 = vmatprep.subr.mxu0 0.0
    %557 = vmatpush1.msra.mxu0 0.0
    %558 = vmatprep.subr.mxu0 0.0
    %559 = vmatpush1.msra.mxu0 0.0
    %560 = vmatprep.subr.mxu0 0.0
    %561 = vmatpush1.msra.mxu0 0.0
    %562 = vmatprep.subr.mxu0 %v438
    %563 = vmatpush1.msra.mxu0 %v437
    %564 = vmatprep.subr.mxu0 %v434
    %565 = vmatpush1.msra.mxu0 %v433
    %566 = vmatprep.subr.mxu0 %v430
    %567 = vmatpush1.msra.mxu0 %v429
    %568 = vmatprep.subr.mxu0 %v426
    %569 = vmatpush1.msra.mxu0 %v425
    %570 = vmatprep.subr.mxu0 0.0
    %571 = vmatpush2.msra.mxu0 0.0
    %572 = vmatprep.subr.mxu0 0.0
    %573 = vmatpush2.msra.mxu0 0.0
    %574 = vmatprep.subr.mxu0 0.0
    %575 = vmatpush2.msra.mxu0 0.0
    %576 = vmatprep.subr.mxu0 0.0
    %577 = vmatpush2.msra.mxu0 0.0
    %578 = vmatprep.subr.mxu0 0.0
    %579 = vmatpush2.msra.mxu0 0.0
    %580 = vmatprep.subr.mxu0 0.0
    %581 = vmatpush2.msra.mxu0 0.0
    %582 = vmatprep.subr.mxu0 0.0
    %583 = vmatpush2.msra.mxu0 0.0
    %584 = vmatprep.subr.mxu0 0.0
    %585 = vmatpush2.msra.mxu0 0.0
    %586 = vmatprep.subr.mxu0 0.0
    %587 = vmatpush2.msra.mxu0 0.0
    %588 = vmatprep.subr.mxu0 0.0
    %589 = vmatpush2.msra.mxu0 0.0
    %590 = vmatprep.subr.mxu0 0.0
    %591 = vmatpush2.msra.mxu0 0.0
    %592 = vmatprep.subr.mxu0 0.0
    %593 = vmatpush2.msra.mxu0 0.0
    %594 = vmatprep.subr.mxu0 0.0
    %595 = vmatpush2.msra.mxu0 0.0
    %596 = vmatprep.subr.mxu0 0.0
    %597 = vmatpush2.msra.mxu0 0.0
    %598 = vmatprep.subr.mxu0 0.0
    %599 = vmatpush2.msra.mxu0 0.0
    %600 = vmatprep.subr.mxu0 0.0
    %601 = vmatpush2.msra.mxu0 0.0
    %602 = vmatprep.mubr.f32.mxu0 0.0
    %603 = vmatmul.mubr.f32.gmra.mxu0 %v465
    %v604 = vpop.f32.mrf.mxu0
    %v605 = vadd.f32 %v452, %v604
    %v606 = vpop.f32.mrf.mxu0
    %v607 = vadd.f32 %v456, %v606
    %608 = vdwg.mxu0
    %v609 = vtanh.pop %v534
    %v610 = vtanh.pop %v536
    %v611 = vtanh.pop %v605
    %v612 = vtanh.pop %v607
    %v617 = vcombine.low %v609, %v610
    %v618 = vcombine.low %v611, %v612
    %v620 = vunpack.c.l.s4 1966171168
    %v621 = vunpack.c.0.s8 %v620
    %v622 = vlaneseq
    %v623 = vshrl.u32 %v622, 7
    %v624 = vsub.s32 %v621, %v623
    %v625 = vrot.slane %v617, %v624
    %v627 = vunpack.c.l.s4 1966171168
    %v628 = vunpack.c.0.s8 %v627
    %v629 = vlaneseq
    %v630 = vshrl.u32 %v629, 7
    %v631 = vsub.s32 %v628, %v630
    %v632 = vrot.slane %v618, %v631
    %v633 = vcombine.low %v625, %v632
    %v634 = vcombine.high %v625, %v632
    %v636 = vunpack.c.l.s4 1966171168
    %v637 = vunpack.c.0.s8 %v636
    %v638 = vlaneseq
    %v639 = vshrl.u32 %v638, 7
    %v640 = vsub.s32 %v637, %v639
    %v641 = vrot.slane %v633, %v640
    %v643 = vunpack.c.l.s4 1966171168
    %v644 = vunpack.c.0.s8 %v643
    %v645 = vlaneseq
    %v646 = vshrl.u32 %v645, 7
    %v647 = vsub.s32 %v644, %v646
    %v648 = vrot.slane %v634, %v647
    %v649 = vld [vmem:[%s9] sm:$0xff]
    %v650 = vlaneseq
    %v651 = vshrl.u32 %v650, 7
    %v652 = vsub.s32 0, %v651
    %v653 = vrot.slane %v641, %v652
    %v654 = vlaneseq
    %v655 = vshrl.u32 %v654, 7
    %v656 = vsub.s32 1, %v655
    %v657 = vrot.slane %v641, %v656
    %v658 = vlaneseq
    %v659 = vshrl.u32 %v658, 7
    %v660 = vsub.s32 2, %v659
    %v661 = vrot.slane %v641, %v660
    %v662 = vlaneseq
    %v663 = vshrl.u32 %v662, 7
    %v664 = vsub.s32 3, %v663
    %v665 = vrot.slane %v641, %v664
    %v666 = vlaneseq
    %v667 = vshrl.u32 %v666, 7
    %v668 = vsub.s32 0, %v667
    %v669 = vrot.slane %v648, %v668
    %v670 = vlaneseq
    %v671 = vshrl.u32 %v670, 7
    %v672 = vsub.s32 1, %v671
    %v673 = vrot.slane %v648, %v672
    %v674 = vlaneseq
    %v675 = vshrl.u32 %v674, 7
    %v676 = vsub.s32 2, %v675
    %v677 = vrot.slane %v648, %v676
    %v678 = vlaneseq
    %v679 = vshrl.u32 %v678, 7
    %v680 = vsub.s32 3, %v679
    %v681 = vrot.slane %v648, %v680
    %v691 = vcombine.high %v649, %v649
    %v693 = vunpack.c.l.s4 1983009808
    %v694 = vunpack.c.0.s8 %v693
    %v695 = vlaneseq
    %v696 = vshrl.u32 %v695, 7
    %v697 = vsub.s32 %v694, %v696
    %v698 = vrot.slane %v649, %v697
    %v700 = vunpack.c.l.s4 1983009808
    %v701 = vunpack.c.0.s8 %v700
    %v702 = vlaneseq
    %v703 = vshrl.u32 %v702, 7
    %v704 = vsub.s32 %v701, %v703
    %v705 = vrot.slane %v691, %v704
    %v706 = vcombine.high %v698, %v698
    %v707 = vcombine.high %v705, %v705
    %v712 = vmul.f32 %v653, %v698
    %v713 = vmul.f32 %v657, %v706
    %v714 = vmul.f32 %v661, %v705
    %v715 = vmul.f32 %v665, %v707
    %v716 = vmul.f32 %v669, %v698
    %v717 = vmul.f32 %v673, %v706
    %v718 = vmul.f32 %v677, %v705
    %v719 = vmul.f32 %v681, %v707
    %vm720 = vcmask 1041408
    %v721 = vsel %vm720, %v712, 0.0
    %v722 = vsel %vm720, %v713, 0.0
    %v723 = vadd.f32 %v721, %v722
    %v724 = vsel %vm720, %v714, 0.0
    %v725 = vadd.f32 %v723, %v724
    %v726 = vsel %vm720, %v715, 0.0
    %v727 = vadd.f32 %v725, %v726
    %728 = vadd.xlane.f32.xlu0 %v727
    %v729 = vpop.xlane.xlu0 %728
    %v730 = vsel %vm720, %v716, 0.0
    %v731 = vsel %vm720, %v717, 0.0
    %v732 = vadd.f32 %v730, %v731
    %v733 = vsel %vm720, %v718, 0.0
    %v734 = vadd.f32 %v732, %v733
    %v735 = vsel %vm720, %v719, 0.0
    %v736 = vadd.f32 %v734, %v735
    %737 = vadd.xlane.f32.xlu0 %v736
    %v738 = vpop.xlane.xlu0 %737
    %v739 = vld [vmem:[%s10] sm:$0x1]
    %v741 = vlaneseq
    %v742 = vshrl.u32 %v741, 7
    %v743 = vsub.s32 0, %v742
    %v744 = vrot.slane %v739, %v743
    %746 = vbcast.lane.b32.xlu0 %v744, 256
    %v747 = vpop.permute.xlu0 %746
    %v749 = vadd.f32 %v729, %v747
    %v750 = vadd.f32 %v738, %v747
    %v751 = vxor.u32 %v749, 2147483648
    %v752 = vxor.u32 %v750, 2147483648
    %v753 = vmul.f32 %v751, 1.442695
    %v754 = vpow.pop %v753
    %v755 = vmul.f32 %v752, 1.442695
    %v756 = vpow.pop %v755
    %v757 = vadd.f32 %v754, 1.0
    %v758 = vadd.f32 %v756, 1.0
    %v759 = vrcp.pop %v757
    %v760 = vmul.f32 1.0, %v759
    %v761 = vrcp.pop %v758
    %v762 = vmul.f32 1.0, %v761
    %763 = vst [vmem:[%s11] sm:$0xff] 0.0
    %766 = vset.pattern.permute.xlu0 0
    %767 = vperm.xlu0 %766, %v760
    %v768 = vpop.permute.xlu0 %767
    %769 = vset.pattern.permute.xlu0 0
    %770 = vperm.xlu0 %769, %v762
    %v771 = vpop.permute.xlu0 %770
    %v772 = vlaneseq
    %v773 = vand.u32 %v772, 127
    %v774 = vlaneseq
    %v775 = vshrl.u32 %v774, 7
    %v776 = vsub.s32 %v773, %v775
    %v777 = vrot.slane %v768, %v776
    %v778 = vlaneseq
    %v779 = vshrl.u32 %v778, 7
    %v780 = vsub.s32 %v773, %v779
    %v781 = vrot.slane %v771, %v780
    %v782 = vsel %vm463, %v781, %v777
    %vm784 = vcmask 9216
    %785 = vst.msk [vmem:[%s11] sm:$0x3] %vm784, %v782
    // Predicated region
    $region54: #{custom_model_2_head.1} parent=1 // pred_check
      _
    $region55: #{custom_model_2_head.1} parent=1 // pred_check_branch
      %787 = sbr.rel (0) target = $region57
    $region56: #{custom_model_2_head.1} parent=1 // pred_region
      _
    $region57: #{custom_model_2_head.1} parent=1 // pred_fallthru
      _
    // Predicated region
    $region58: #{custom_model_2_head.1} parent=1 // pred_check
      _
    $region59: #{custom_model_2_head.1} parent=1 // pred_check_branch
      %789 = sbr.rel (0) target = $region61
    $region60: #{custom_model_2_head.1} parent=1 // pred_region
      _
    $region61: #{custom_model_2_head.1} parent=1 // pred_fallthru
      _
    %790 = vsyncpa [#allocation5], 1
    %791 = vsyncpa [#allocation6], 1

</llo_original>
